<compile_context>
chip_gen: v7x
topology: tpu7x:2x2x1
jax: 0.10.0
libtpu: 0.0.40
codegen_flags: <defaults>
</compile_context>

<pallas_src>
import jax
import jax.numpy as jnp
from jax.experimental import pallas as pl
from jax.experimental.pallas import tpu as pltpu

_LANE_CAP = 8192                   # max lane width we will pick
_SMALL_INPUT_BYTES = 256 * 1024    # below this, plain jnp wins (launch overhead)


def _sublane_multiple(dtype) -> int:
    # Min sublane tiling is dtype-dependent: (8,128) f32, (16,128) bf16, (32,128) int8.
    return max(8, 32 // jnp.dtype(dtype).itemsize)


def _choose_lane(shape, total):
    """Pick a lane (last-dim) width: a multiple of 128 that exactly divides the
    element count, preferably a product of trailing dims (cheap reshape)."""
    cands = []
    prod = 1
    for d in reversed(shape):
        prod *= int(d)
        if prod % 128 == 0:
            cands.append(prod)
    if not cands and total % 128 == 0:
        lane = 128
        while lane * 2 <= _LANE_CAP and total % (lane * 2) == 0:
            lane *= 2
        cands.append(lane)
    if not cands:
        return None
    small = [c for c in cands if c <= _LANE_CAP]
    return max(small) if small else min(cands)


def _tile_budget():
    """(per-buffer tile bytes, vmem_limit_bytes), scaled to the chip's VMEM."""
    try:
        vmem = pltpu.get_tpu_info().vmem_capacity_bytes
    except Exception:
        vmem = None
    if vmem is not None and vmem >= (100 << 20):   # v5e / v6e: 128 MiB physical VMEM
        return 8 << 20, 48 << 20
    return 4 << 20, 32 << 20                       # v7x (64 MiB) / unknown: conservative


def _softshk_kernel(l_ref, x_ref, o_ref):
    # l_ref: (1,) f32 threshold in SMEM; x_ref / o_ref: (tile_r, lane) VMEM tiles.
    l = l_ref[0].astype(x_ref.dtype)
    x = x_ref[...]
    zero = jnp.zeros((), dtype=x.dtype)
    # Exact soft-shrink: relu(x - l) - relu(-x - l).  HBM-bound -> VPU ops are free.
    o_ref[...] = jnp.maximum(x - l, zero) - jnp.maximum(-x - l, zero)


def soft_shk(x, l, *, force_pallas=False, donate=False):
    """Soft-shrinkage: relu(x - l) - relu(-x - l), elementwise (any shape)."""
    orig_shape = x.shape
    dtype = x.dtype
    total = x.size
    itemsize = jnp.dtype(dtype).itemsize

    l32 = jnp.asarray(l, dtype=jnp.float32)

    def _jnp_path():
        lc = l32.astype(dtype)
        zero = jnp.zeros((), dtype=dtype)
        return jnp.maximum(x - lc, zero) - jnp.maximum(-x - lc, zero)

    # Small-input fallback: pallas_call launch/pipeline overhead dominates there.
    if not force_pallas and total * itemsize < _SMALL_INPUT_BYTES:
        return _jnp_path()

    lane = _choose_lane(orig_shape, total)
    if lane is None:
        # No multiple-of-128 factorization: padding would add extra HBM copies,
        # so a fused elementwise XLA op is the better choice.
        return _jnp_path()

    sub = _sublane_multiple(dtype)
    tile_bytes, vmem_limit = _tile_budget()

    max_rows = (tile_bytes // (lane * itemsize)) // sub * sub
    if max_rows < sub:
        # Pathologically wide lane: a single row blows the per-buffer budget.
        return _jnp_path()

    m = total // lane                      # exact: lane divides total
    if m <= max_rows:
        tile_r = m                         # full-array block (always legal)
    else:
        tile_r = max_rows                  # (sub,128)-aligned; ragged last block is masked
    grid = (pl.cdiv(m, tile_r),)

    x2d = x.reshape(m, lane)               # no pad, no trailing slice
    l_arr = l32.reshape(1)

    out2d = pl.pallas_call(
        _softshk_kernel,
        out_shape=jax.ShapeDtypeStruct((m, lane), dtype),
        grid=grid,
        in_specs=[
            pl.BlockSpec(memory_space=pltpu.MemorySpace.SMEM),   # scalar threshold
            pl.BlockSpec((tile_r, lane), lambda i: (i, 0)),      # x row tile
        ],
        out_specs=pl.BlockSpec((tile_r, lane), lambda i: (i, 0)),
        compiler_params=pltpu.CompilerParams(
            dimension_semantics=("parallel",),   # shards across TCs where available
            vmem_limit_bytes=vmem_limit,
        ),
        input_output_aliases=({1: 0} if donate else {}),
    )(l_arr, x2d)

    return out2d.reshape(orig_shape)


if __name__ == "__main__":
    key = jax.random.PRNGKey(0)

    # Small NCHW shape consistent with the module's conv-style inputs.
    N, C, H, W = 2, 4, 16, 16
    x = jax.random.normal(key, (N, C, H, W), dtype=jnp.float32)
    l = jnp.float32(0.3)

    # Exercise the Pallas kernel directly (bypassing the small-input fallback).
    out = soft_shk(x, l, force_pallas=True)
    out = jax.block_until_ready(out)

    # Reference check in plain JAX (same semantics as the PyTorch module).
    ref = jnp.maximum(x - l, 0.0) - jnp.maximum(-x - l, 0.0)
    assert out.shape == (N, C, H, W)
    assert jnp.allclose(out, ref, atol=1e-6), "pallas path mismatch vs reference"

    # Auto path (small-input jnp fallback) must agree as well.
    out_auto = jax.block_until_ready(soft_shk(x, l))
    assert jnp.allclose(out_auto, ref, atol=1e-6), "auto path mismatch vs reference"

    print("KERNEL_OK")
</pallas_src>

<mosaic_0001>
module attributes {stable_mosaic.version = 11 : i64} {
  func.func @_softshk_kernel(%arg0: i32, %arg1: memref<1xf32, #tpu.memory_space<smem>>, %arg2: memref<1x2048xf32, #tpu.memory_space<vmem>>, %arg3: memref<1x2048xf32, #tpu.memory_space<vmem>>) attributes {dimension_semantics = [#tpu.dimension_semantics<parallel>], iteration_bounds = array<i64: 1>, scalar_prefetch = 0 : i64, scratch_operands = 0 : i64, tpu.core_type = #tpu.core_type<tc>, window_params = [{transform_indices = @transform_0, window_bounds = array<i64: 1>}, {transform_indices = @transform_1, window_bounds = array<i64: 1, 2048>}, {transform_indices = @transform_2, window_bounds = array<i64: 1, 2048>}]} {
    %c0 = arith.constant 0 : index
    %0 = memref.load %arg1[%c0] : memref<1xf32, #tpu.memory_space<smem>>
    %c0_0 = arith.constant 0 : index
    %c0_1 = arith.constant 0 : index
    %1 = vector.load %arg2[%c0_0, %c0_1] : memref<1x2048xf32, #tpu.memory_space<vmem>>, vector<1x2048xf32>
    %2 = vector.broadcast %0 : f32 to vector<1x2048xf32>
    %3 = arith.subf %1, %2 : vector<1x2048xf32>
    %cst = arith.constant 0.000000e+00 : f32
    %4 = vector.broadcast %cst : f32 to vector<1x2048xf32>
    %5 = arith.maximumf %3, %4 : vector<1x2048xf32>
    %cst_2 = arith.constant 0.000000e+00 : f32
    %6 = vector.broadcast %cst_2 : f32 to vector<1x2048xf32>
    %7 = arith.subf %6, %1 : vector<1x2048xf32>
    %8 = vector.broadcast %0 : f32 to vector<1x2048xf32>
    %9 = arith.subf %7, %8 : vector<1x2048xf32>
    %cst_3 = arith.constant 0.000000e+00 : f32
    %10 = vector.broadcast %cst_3 : f32 to vector<1x2048xf32>
    %11 = arith.maximumf %9, %10 : vector<1x2048xf32>
    %12 = arith.subf %5, %11 : vector<1x2048xf32>
    %c0_4 = arith.constant 0 : index
    %c0_5 = arith.constant 0 : index
    %13 = vector.load %arg3[%c0_4, %c0_5] : memref<1x2048xf32, #tpu.memory_space<vmem>>, vector<1x2048xf32>
    tpu.vector_store %arg3[%c0_4, %c0_5], %12 {strides = array<i32>} : memref<1x2048xf32, #tpu.memory_space<vmem>>, vector<1x2048xf32>,
    return
  }
  func.func @transform_0(%arg0: i32) -> i32 {
    %c0_i32 = arith.constant 0 : i32
    %c0_i32_0 = arith.constant 0 : i32
    return %c0_i32 : i32
  }
  func.func @transform_1(%arg0: i32) -> (i32, i32) {
    %c0_i32 = arith.constant 0 : i32
    %c0_i32_0 = arith.constant 0 : i32
    return %arg0, %c0_i32 : i32, i32
  }
  func.func @transform_2(%arg0: i32) -> (i32, i32) {
    %c0_i32 = arith.constant 0 : i32
    %c0_i32_0 = arith.constant 0 : i32
    return %arg0, %c0_i32 : i32, i32
  }
}

</mosaic_0001>

<llo_original>
// kernel: tpu_custom_call.1
$region0: #{tpu_custom_call.1}
  #allocation0 [shape = 'u32[]', space=smem, size = 0x4, offset = 0x4, fixed_abs, tag = 'smem constant byte address 0x4 - core index']
  #allocation1 [shape = 'u32[144,128]{1,0:T(1,128)}', space=vmem, size = 0x12000, scoped, tag = 'internal scratch']
  #allocation2 [shape = 'f32[1]{0:T(128)S(6)}', space=smem, size = 0x200, scoped, tag = 'scoped memory for tpu_custom_call.1']
  %s0 = inlined_call_operand.<no memory space> [shape: f32[1], index: 0, kind: input, shape index: {}]
  %s1 = inlined_call_operand.hbm [shape: f32[1,2048], index: 1, kind: input, shape index: {}]
  %s2 = inlined_call_operand.hbm [shape: f32[1,2048], index: 2, kind: output, shape index: {}]
  %s3 = sld [smem:[#allocation0]]
  $region22: #{tpu_custom_call.1} parent=0
    _
  %s5 = ssub.s32 1, %s3
  %s6 = scalar_select 0, %s5, %s3
  %7 = sst [smem:[#allocation2]] %s0
  $region1: #{tpu_custom_call.1} parent=0
    #allocation3 [shape = 'u8[8192]{0}', space=vmem, size = 0x2000, scoped, tag = 'input window, operand 1, single buffered']
    #allocation4 [shape = 's32[1]{0}', space=sflag, size = 0x4, scoped, tag = 'scoped memory for tpu_custom_call.1']
    #allocation5 [shape = 's32[1]{0}', space=sflag, size = 0x4, scoped, tag = 'scoped memory for tpu_custom_call.1']
    #allocation6 [shape = 'u8[8192]{0}', space=vmem, size = 0x2000, scoped, tag = 'output window, operand 0, single buffered']
    %8 = vsyncpa [#allocation4], 0
    %9 = vsyncpa [#allocation5], 0
    // Predicated region
    $region2: #{tpu_custom_call.1} parent=1 // pred_check
      _
    $region3: #{tpu_custom_call.1} parent=1 // pred_check_branch
      %11 = sbr.rel (0) target = $region5
    $region4: #{tpu_custom_call.1} parent=1 // pred_region
      _
    $region5: #{tpu_custom_call.1} parent=1 // pred_fallthru
      _
    // Predicated region
    $region6: #{tpu_custom_call.1} parent=1 // pred_check
      _
    $region7: #{tpu_custom_call.1} parent=1 // pred_check_branch
      %13 = sbr.rel (0) target = $region9
    $region8: #{tpu_custom_call.1} parent=1 // pred_region
      %s15 = ssub.s32 256, 256
      %16 = vsyncadd [#allocation4], %s15
      %s18 = sshll.u32 [#allocation3], 4
      %s19 = int_to_ptr.vmem [resolvable:$true] %s18
      %21 = dma.hbm_to_vmem [thread:$0]  %s1, 256, %s19, [#allocation4]
    $region9: #{tpu_custom_call.1} parent=1 // pred_fallthru
      _
    // Predicated region
    $region10: #{tpu_custom_call.1} parent=1 // pred_check
      _
    $region11: #{tpu_custom_call.1} parent=1 // pred_check_branch
      %23 = sbr.rel (0) target = $region13
    $region12: #{tpu_custom_call.1} parent=1 // pred_region
      %24 = dma.done [#allocation4], 256
    $region13: #{tpu_custom_call.1} parent=1 // pred_fallthru
      _
    %s25 = sld [smem:[#allocation2]]
    %v26 = vld [vmem:[#allocation3] sm:$0xff]
    %v27 = vld [vmem:[#allocation3 + $0x8] sm:$0xff]
    %v28 = vstv %s25
    %v29 = vsub.f32 %v26, %v28
    %v30 = vsub.f32 %v27, %v28
    %v31 = vmax.f32 %v29, 0.0
    %v32 = vmax.f32 %v30, 0.0
    %v33 = vsub.f32 0.0, %v26
    %v34 = vsub.f32 0.0, %v27
    %v35 = vsub.f32 %v33, %v28
    %v36 = vsub.f32 %v34, %v28
    %v37 = vmax.f32 %v35, 0.0
    %v38 = vmax.f32 %v36, 0.0
    %v39 = vsub.f32 %v31, %v37
    %v40 = vsub.f32 %v32, %v38
    %41 = vst [vmem:[#allocation6] sm:$0xff] %v39
    %42 = vst [vmem:[#allocation6 + $0x8] sm:$0xff] %v40
    // Predicated region
    $region14: #{tpu_custom_call.1} parent=1 // pred_check
      _
    $region15: #{tpu_custom_call.1} parent=1 // pred_check_branch
      %44 = sbr.rel (0) target = $region17
    $region16: #{tpu_custom_call.1} parent=1 // pred_region
      %s46 = ssub.s32 256, 256
      %47 = vsyncadd [#allocation5], %s46
      %s49 = sshll.u32 [#allocation6], 4
      %s50 = int_to_ptr.vmem [resolvable:$true] %s49
      %52 = dma.vmem_to_hbm [thread:$0]  %s50, 256, %s2, [#allocation5]
    $region17: #{tpu_custom_call.1} parent=1 // pred_fallthru
      _
    // Predicated region
    $region18: #{tpu_custom_call.1} parent=1 // pred_check
      _
    $region19: #{tpu_custom_call.1} parent=1 // pred_check_branch
      %54 = sbr.rel (0) target = $region21
    $region20: #{tpu_custom_call.1} parent=1 // pred_region
      %55 = dma.done [#allocation5], 256
    $region21: #{tpu_custom_call.1} parent=1 // pred_fallthru
      _
    %56 = vsyncpa [#allocation4], 1
    %57 = vsyncpa [#allocation5], 1

</llo_original>
